<compile_context>
chip_gen: v7x
topology: tpu7x:2x2x1
jax: 0.10.0
libtpu: 0.0.40
codegen_flags: <defaults>
</compile_context>

<pallas_src>
import jax
import jax.numpy as jnp
from jax.experimental import pallas as pl
from jax.experimental.pallas import tpu as pltpu

_LANES = 1024          # lane-dense last dim (multiple of 128)
_MAX_TILE_ROWS = 256   # (256, 1024) f32 = 1 MiB per buffer


def _round_up(x, m):
    return ((x + m - 1) // m) * m


def _sampler_kernel(mu_ref, logvar_ref, eps_ref, out_ref):
    # Fused elementwise pass: exp goes to the EUP, mul/add to the VPU --
    # both have large slack in this memory-bound kernel.
    mu = mu_ref[...].astype(jnp.float32)
    logvar = logvar_ref[...].astype(jnp.float32)
    eps = eps_ref[...]
    std = jnp.exp(0.5 * logvar)
    out_ref[...] = (eps * std + mu).astype(out_ref.dtype)


def _compiler_params():
    cp_cls = getattr(pltpu, "CompilerParams", None) or getattr(
        pltpu, "TPUCompilerParams", None)
    if cp_cls is None:
        return None
    return cp_cls(dimension_semantics=("parallel",))


def sampler(mu, logvar, key):
    """Reparameterization-trick sampler: eps * exp(0.5*logvar) + mu."""
    assert mu.shape == logvar.shape
    orig_shape = mu.shape
    orig_dtype = mu.dtype
    total = int(mu.size)

    # Gaussian noise, drawn in f32 regardless of input dtype.
    eps = jax.random.normal(key, orig_shape, dtype=jnp.float32)

    # Flatten to a lane-dense (rows, 1024) slab, padded to whole tiles.
    rows = _round_up(max(total, 1), _LANES) // _LANES
    tile_rows = min(_MAX_TILE_ROWS, _round_up(rows, 8))
    rows_p = _round_up(rows, tile_rows)
    total_p = rows_p * _LANES
    itemsize = jnp.dtype(orig_dtype).itemsize

    def to_slab(x):
        flat = x.reshape(-1)
        flat = jnp.pad(flat, (0, total_p - total))
        return flat.reshape(rows_p, _LANES)

    mu2, lv2, eps2 = to_slab(mu), to_slab(logvar), to_slab(eps)

    grid = (rows_p // tile_rows,)
    block = (tile_rows, _LANES)

    def spec():
        return pl.BlockSpec(block, lambda i: (i, 0))

    out2 = pl.pallas_call(
        _sampler_kernel,
        out_shape=jax.ShapeDtypeStruct((rows_p, _LANES), orig_dtype),
        grid=grid,
        in_specs=[spec(), spec(), spec()],
        out_specs=spec(),
        compiler_params=_compiler_params(),
        cost_estimate=pl.CostEstimate(
            flops=3 * total_p,
            transcendentals=total_p,
            bytes_accessed=total_p * (3 * itemsize + 4),
        ),
    )(mu2, lv2, eps2)

    return out2.reshape(-1)[:total].reshape(orig_shape)


if __name__ == "__main__":
    key = jax.random.PRNGKey(0)
    k_mu, k_lv, k_eps = jax.random.split(key, 3)

    # Small NCHW shapes consistent with a VAE latent-map sampler.
    mu = jax.random.normal(k_mu, (2, 4, 16, 16), dtype=jnp.float32)
    logvar = jax.random.normal(k_lv, (2, 4, 16, 16), dtype=jnp.float32) * 0.1

    out = sampler(mu, logvar, k_eps)
    out = jax.block_until_ready(out)

    # Reference uses the same key/shape -> identical eps.
    eps_ref = jax.random.normal(k_eps, mu.shape, dtype=jnp.float32)
    ref = eps_ref * jnp.exp(0.5 * logvar) + mu

    assert out.shape == mu.shape
    assert out.dtype == mu.dtype
    assert bool(jnp.all(jnp.isfinite(out)))
    assert bool(jnp.allclose(out, ref, rtol=1e-5, atol=1e-5))

    print("KERNEL_OK")
</pallas_src>

<mosaic_0001>
module attributes {stable_mosaic.version = 11 : i64} {
  func.func @_sampler_kernel(%arg0: i32, %arg1: memref<8x1024xf32, #tpu.memory_space<vmem>>, %arg2: memref<8x1024xf32, #tpu.memory_space<vmem>>, %arg3: memref<8x1024xf32, #tpu.memory_space<vmem>>, %arg4: memref<8x1024xf32, #tpu.memory_space<vmem>>) attributes {dimension_semantics = [#tpu.dimension_semantics<parallel>], iteration_bounds = array<i64: 1>, scalar_prefetch = 0 : i64, scratch_operands = 0 : i64, tpu.core_type = #tpu.core_type<tc>, window_params = [{transform_indices = @transform_0, window_bounds = array<i64: 8, 1024>}, {transform_indices = @transform_1, window_bounds = array<i64: 8, 1024>}, {transform_indices = @transform_2, window_bounds = array<i64: 8, 1024>}, {transform_indices = @transform_3, window_bounds = array<i64: 8, 1024>}]} {
    %c0 = arith.constant 0 : index
    %c0_0 = arith.constant 0 : index
    %0 = vector.load %arg1[%c0, %c0_0] : memref<8x1024xf32, #tpu.memory_space<vmem>>, vector<8x1024xf32>
    %c0_1 = arith.constant 0 : index
    %c0_2 = arith.constant 0 : index
    %1 = vector.load %arg2[%c0_1, %c0_2] : memref<8x1024xf32, #tpu.memory_space<vmem>>, vector<8x1024xf32>
    %c0_3 = arith.constant 0 : index
    %c0_4 = arith.constant 0 : index
    %2 = vector.load %arg3[%c0_3, %c0_4] : memref<8x1024xf32, #tpu.memory_space<vmem>>, vector<8x1024xf32>
    %cst = arith.constant 5.000000e-01 : f32
    %3 = vector.broadcast %cst : f32 to vector<8x1024xf32>
    %4 = arith.mulf %3, %1 : vector<8x1024xf32>
    %5 = math.exp %4 : vector<8x1024xf32>
    %6 = arith.mulf %2, %5 : vector<8x1024xf32>
    %7 = arith.addf %6, %0 : vector<8x1024xf32>
    %c0_5 = arith.constant 0 : index
    %c0_6 = arith.constant 0 : index
    %8 = vector.load %arg4[%c0_5, %c0_6] : memref<8x1024xf32, #tpu.memory_space<vmem>>, vector<8x1024xf32>
    tpu.vector_store %arg4[%c0_5, %c0_6], %7 {strides = array<i32>} : memref<8x1024xf32, #tpu.memory_space<vmem>>, vector<8x1024xf32>,
    return
  }
  func.func @transform_0(%arg0: i32) -> (i32, i32) {
    %c0_i32 = arith.constant 0 : i32
    %c0_i32_0 = arith.constant 0 : i32
    return %arg0, %c0_i32 : i32, i32
  }
  func.func @transform_1(%arg0: i32) -> (i32, i32) {
    %c0_i32 = arith.constant 0 : i32
    %c0_i32_0 = arith.constant 0 : i32
    return %arg0, %c0_i32 : i32, i32
  }
  func.func @transform_2(%arg0: i32) -> (i32, i32) {
    %c0_i32 = arith.constant 0 : i32
    %c0_i32_0 = arith.constant 0 : i32
    return %arg0, %c0_i32 : i32, i32
  }
  func.func @transform_3(%arg0: i32) -> (i32, i32) {
    %c0_i32 = arith.constant 0 : i32
    %c0_i32_0 = arith.constant 0 : i32
    return %arg0, %c0_i32 : i32, i32
  }
}

</mosaic_0001>

<llo_original>
// kernel: tpu_custom_call.1
$region0: #{tpu_custom_call.1}
  #allocation0 [shape = 'u32[]', space=smem, size = 0x4, offset = 0x4, fixed_abs, tag = 'smem constant byte address 0x4 - core index']
  #allocation1 [shape = 'u32[144,128]{1,0:T(1,128)}', space=vmem, size = 0x12000, scoped, tag = 'internal scratch']
  %s0 = inlined_call_operand.hbm [shape: f32[8,1024], index: 0, kind: input, shape index: {}]
  %s1 = inlined_call_operand.hbm [shape: f32[8,1024], index: 1, kind: input, shape index: {}]
  %s2 = inlined_call_operand.hbm [shape: f32[8,1024], index: 2, kind: input, shape index: {}]
  %s3 = inlined_call_operand.hbm [shape: f32[8,1024], index: 3, kind: output, shape index: {}]
  %s4 = sld [smem:[#allocation0]]
  $region34: #{tpu_custom_call.1} parent=0
    _
  %s6 = ssub.s32 1, %s4
  %s7 = scalar_select 0, %s6, %s4
  $region1: #{tpu_custom_call.1} parent=0
    #allocation2 [shape = 'u8[32768]{0}', space=vmem, size = 0x8000, scoped, tag = 'input window, operand 0, single buffered']
    #allocation3 [shape = 's32[1]{0}', space=sflag, size = 0x4, scoped, tag = 'scoped memory for tpu_custom_call.1']
    #allocation4 [shape = 's32[1]{0}', space=sflag, size = 0x4, scoped, tag = 'scoped memory for tpu_custom_call.1']
    #allocation5 [shape = 'u8[32768]{0}', space=vmem, size = 0x8000, scoped, tag = 'input window, operand 1, single buffered']
    #allocation6 [shape = 's32[1]{0}', space=sflag, size = 0x4, scoped, tag = 'scoped memory for tpu_custom_call.1']
    #allocation7 [shape = 'u8[32768]{0}', space=vmem, size = 0x8000, scoped, tag = 'input window, operand 2, single buffered']
    #allocation8 [shape = 'u8[32768]{0}', space=vmem, size = 0x8000, scoped, tag = 'output window, operand 0, single buffered']
    %8 = vsyncpa [#allocation3], 0
    %9 = vsyncpa [#allocation6], 0
    %10 = vsyncpa [#allocation4], 0
    // Predicated region
    $region2: #{tpu_custom_call.1} parent=1 // pred_check
      _
    $region3: #{tpu_custom_call.1} parent=1 // pred_check_branch
      %12 = sbr.rel (0) target = $region5
    $region4: #{tpu_custom_call.1} parent=1 // pred_region
      %s14 = ssub.s32 1024, 1024
      %15 = vsyncadd [#allocation3], %s14
      %s17 = sshll.u32 [#allocation2], 4
      %s18 = int_to_ptr.vmem [resolvable:$true] %s17
      %20 = dma.hbm_to_vmem [thread:$0]  %s0, 1024, %s18, [#allocation3]
    $region5: #{tpu_custom_call.1} parent=1 // pred_fallthru
      _
    // Predicated region
    $region6: #{tpu_custom_call.1} parent=1 // pred_check
      _
    $region7: #{tpu_custom_call.1} parent=1 // pred_check_branch
      %22 = sbr.rel (0) target = $region9
    $region8: #{tpu_custom_call.1} parent=1 // pred_region
      %s24 = ssub.s32 1024, 1024
      %25 = vsyncadd [#allocation6], %s24
      %s27 = sshll.u32 [#allocation5], 4
      %s28 = int_to_ptr.vmem [resolvable:$true] %s27
      %30 = dma.hbm_to_vmem [thread:$0]  %s1, 1024, %s28, [#allocation6]
    $region9: #{tpu_custom_call.1} parent=1 // pred_fallthru
      _
    // Predicated region
    $region10: #{tpu_custom_call.1} parent=1 // pred_check
      _
    $region11: #{tpu_custom_call.1} parent=1 // pred_check_branch
      %32 = sbr.rel (0) target = $region13
    $region12: #{tpu_custom_call.1} parent=1 // pred_region
      %s34 = ssub.s32 1024, 1024
      %35 = vsyncadd [#allocation6], %s34
      %s37 = sshll.u32 [#allocation7], 4
      %s38 = int_to_ptr.vmem [resolvable:$true] %s37
      %40 = dma.hbm_to_vmem [thread:$0]  %s2, 1024, %s38, [#allocation6]
    $region13: #{tpu_custom_call.1} parent=1 // pred_fallthru
      _
    // Predicated region
    $region14: #{tpu_custom_call.1} parent=1 // pred_check
      _
    $region15: #{tpu_custom_call.1} parent=1 // pred_check_branch
      %42 = sbr.rel (0) target = $region17
    $region16: #{tpu_custom_call.1} parent=1 // pred_region
      %43 = dma.done [#allocation3], 1024
    $region17: #{tpu_custom_call.1} parent=1 // pred_fallthru
      _
    // Predicated region
    $region18: #{tpu_custom_call.1} parent=1 // pred_check
      _
    $region19: #{tpu_custom_call.1} parent=1 // pred_check_branch
      %45 = sbr.rel (0) target = $region21
    $region20: #{tpu_custom_call.1} parent=1 // pred_region
      %46 = dma.done [#allocation6], 1024
    $region21: #{tpu_custom_call.1} parent=1 // pred_fallthru
      _
    // Predicated region
    $region22: #{tpu_custom_call.1} parent=1 // pred_check
      _
    $region23: #{tpu_custom_call.1} parent=1 // pred_check_branch
      %48 = sbr.rel (0) target = $region25
    $region24: #{tpu_custom_call.1} parent=1 // pred_region
      %49 = dma.done [#allocation6], 1024
    $region25: #{tpu_custom_call.1} parent=1 // pred_fallthru
      _
    %v50 = vld [vmem:[#allocation2] sm:$0xff]
    %v51 = vld [vmem:[#allocation2 + $0x8] sm:$0xff]
    %v52 = vld [vmem:[#allocation2 + $0x10] sm:$0xff]
    %v53 = vld [vmem:[#allocation2 + $0x18] sm:$0xff]
    %v54 = vld [vmem:[#allocation2 + $0x20] sm:$0xff]
    %v55 = vld [vmem:[#allocation2 + $0x28] sm:$0xff]
    %v56 = vld [vmem:[#allocation2 + $0x30] sm:$0xff]
    %v57 = vld [vmem:[#allocation2 + $0x38] sm:$0xff]
    %v58 = vld [vmem:[#allocation5] sm:$0xff]
    %v59 = vld [vmem:[#allocation5 + $0x8] sm:$0xff]
    %v60 = vld [vmem:[#allocation5 + $0x10] sm:$0xff]
    %v61 = vld [vmem:[#allocation5 + $0x18] sm:$0xff]
    %v62 = vld [vmem:[#allocation5 + $0x20] sm:$0xff]
    %v63 = vld [vmem:[#allocation5 + $0x28] sm:$0xff]
    %v64 = vld [vmem:[#allocation5 + $0x30] sm:$0xff]
    %v65 = vld [vmem:[#allocation5 + $0x38] sm:$0xff]
    %v66 = vld [vmem:[#allocation7] sm:$0xff]
    %v67 = vld [vmem:[#allocation7 + $0x8] sm:$0xff]
    %v68 = vld [vmem:[#allocation7 + $0x10] sm:$0xff]
    %v69 = vld [vmem:[#allocation7 + $0x18] sm:$0xff]
    %v70 = vld [vmem:[#allocation7 + $0x20] sm:$0xff]
    %v71 = vld [vmem:[#allocation7 + $0x28] sm:$0xff]
    %v72 = vld [vmem:[#allocation7 + $0x30] sm:$0xff]
    %v73 = vld [vmem:[#allocation7 + $0x38] sm:$0xff]
    %v74 = vmul.f32 %v58, 0.5
    %v75 = vmul.f32 %v59, 0.5
    %v76 = vmul.f32 %v60, 0.5
    %v77 = vmul.f32 %v61, 0.5
    %v78 = vmul.f32 %v62, 0.5
    %v79 = vmul.f32 %v63, 0.5
    %v80 = vmul.f32 %v64, 0.5
    %v81 = vmul.f32 %v65, 0.5
    %v82 = vmul.f32 %v74, 1.442695
    %v83 = vpow.pop %v82
    %v84 = vmul.f32 %v75, 1.442695
    %v85 = vpow.pop %v84
    %v86 = vmul.f32 %v76, 1.442695
    %v87 = vpow.pop %v86
    %v88 = vmul.f32 %v77, 1.442695
    %v89 = vpow.pop %v88
    %v90 = vmul.f32 %v78, 1.442695
    %v91 = vpow.pop %v90
    %v92 = vmul.f32 %v79, 1.442695
    %v93 = vpow.pop %v92
    %v94 = vmul.f32 %v80, 1.442695
    %v95 = vpow.pop %v94
    %v96 = vmul.f32 %v81, 1.442695
    %v97 = vpow.pop %v96
    %v98 = vmul.f32 %v66, %v83
    %v99 = vmul.f32 %v67, %v85
    %v100 = vmul.f32 %v68, %v87
    %v101 = vmul.f32 %v69, %v89
    %v102 = vmul.f32 %v70, %v91
    %v103 = vmul.f32 %v71, %v93
    %v104 = vmul.f32 %v72, %v95
    %v105 = vmul.f32 %v73, %v97
    %v106 = vadd.f32 %v98, %v50
    %v107 = vadd.f32 %v99, %v51
    %v108 = vadd.f32 %v100, %v52
    %v109 = vadd.f32 %v101, %v53
    %v110 = vadd.f32 %v102, %v54
    %v111 = vadd.f32 %v103, %v55
    %v112 = vadd.f32 %v104, %v56
    %v113 = vadd.f32 %v105, %v57
    %114 = vst [vmem:[#allocation8] sm:$0xff] %v106
    %115 = vst [vmem:[#allocation8 + $0x8] sm:$0xff] %v107
    %116 = vst [vmem:[#allocation8 + $0x10] sm:$0xff] %v108
    %117 = vst [vmem:[#allocation8 + $0x18] sm:$0xff] %v109
    %118 = vst [vmem:[#allocation8 + $0x20] sm:$0xff] %v110
    %119 = vst [vmem:[#allocation8 + $0x28] sm:$0xff] %v111
    %120 = vst [vmem:[#allocation8 + $0x30] sm:$0xff] %v112
    %121 = vst [vmem:[#allocation8 + $0x38] sm:$0xff] %v113
    // Predicated region
    $region26: #{tpu_custom_call.1} parent=1 // pred_check
      _
    $region27: #{tpu_custom_call.1} parent=1 // pred_check_branch
      %123 = sbr.rel (0) target = $region29
    $region28: #{tpu_custom_call.1} parent=1 // pred_region
      %s125 = ssub.s32 1024, 1024
      %126 = vsyncadd [#allocation4], %s125
      %s128 = sshll.u32 [#allocation8], 4
      %s129 = int_to_ptr.vmem [resolvable:$true] %s128
      %131 = dma.vmem_to_hbm [thread:$0]  %s129, 1024, %s3, [#allocation4]
    $region29: #{tpu_custom_call.1} parent=1 // pred_fallthru
      _
    // Predicated region
    $region30: #{tpu_custom_call.1} parent=1 // pred_check
      _
    $region31: #{tpu_custom_call.1} parent=1 // pred_check_branch
      %133 = sbr.rel (0) target = $region33
    $region32: #{tpu_custom_call.1} parent=1 // pred_region
      %134 = dma.done [#allocation4], 1024
    $region33: #{tpu_custom_call.1} parent=1 // pred_fallthru
      _
    %135 = vsyncpa [#allocation3], 1
    %136 = vsyncpa [#allocation6], 1
    %137 = vsyncpa [#allocation4], 1

</llo_original>
